<compile_context>
chip_gen: v5e
topology: v5e:2x2
jax: 0.10.0
libtpu: 0.0.40
codegen_flags: <defaults>
</compile_context>

<pallas_src>
import functools

import jax
import jax.numpy as jnp
from jax.experimental import pallas as pl
from jax.experimental.pallas import tpu as pltpu

LANE = 128        # fused head width: actor half in lanes [0,64), critic in [64,128)
SUB = 8           # f32 sublane granularity (slab row offsets stay tile aligned)
H_C_OFF = 64      # critic's hidden features live in lanes [64, 64+hidden)
MAX_TB = 512      # batch tile upper bound (sweepable; well under scoped VMEM)


def _round_up(x, m):
    return (x + m - 1) // m * m


def _slab_layout(n_state):
    """Row offsets of the packed parameter slab (all multiples of 8)."""
    dp = _round_up(n_state, SUB)       # padded W1-contraction dim
    off_w1 = 0
    off_b1 = off_w1 + dp
    off_w2 = off_b1 + SUB
    off_b2 = off_w2 + LANE
    off_w3 = off_b2 + SUB
    off_b3 = off_w3 + LANE
    rows = off_b3 + SUB
    return dp, off_w1, off_b1, off_w2, off_b2, off_w3, off_b3, rows


# ----------------------------------------------------------------------------
# Host-side parameter packing: 12 tensors -> one lane-dense (rows, 128) slab.
# ----------------------------------------------------------------------------
def pack_params(actor_params, critic_params, n_state, n_action,
                dtype=jnp.float32):
    aw1, ab1, aw2, ab2, aw3, ab3 = actor_params
    cw1, cb1, cw2, cb2, cw3, cb3 = critic_params
    h1, h2 = aw1.shape[1], aw2.shape[1]
    assert h1 <= H_C_OFF and h2 <= H_C_OFF and 2 * n_action <= H_C_OFF

    dp, ow1, ob1, ow2, ob2, ow3, ob3, rows = _slab_layout(n_state)
    slab = jnp.zeros((rows, LANE), jnp.float32)

    # Layer 1 (fused: both heads consume the same x)
    slab = slab.at[ow1:ow1 + n_state, 0:h1].set(aw1)
    slab = slab.at[ow1:ow1 + n_state, H_C_OFF:H_C_OFF + h1].set(cw1)
    slab = slab.at[ob1, 0:h1].set(ab1.reshape(-1))
    slab = slab.at[ob1, H_C_OFF:H_C_OFF + h1].set(cb1.reshape(-1))

    # Layer 2 (block-diagonal over the two 64-lane halves)
    slab = slab.at[ow2:ow2 + h1, 0:h2].set(aw2)
    slab = slab.at[ow2 + H_C_OFF:ow2 + H_C_OFF + h1, H_C_OFF:H_C_OFF + h2].set(cw2)
    slab = slab.at[ob2, 0:h2].set(ab2.reshape(-1))
    slab = slab.at[ob2, H_C_OFF:H_C_OFF + h2].set(cb2.reshape(-1))

    # Layer 3 (block-diagonal; actor logits -> cols [0,A), critic -> cols [A,2A))
    slab = slab.at[ow3:ow3 + h2, 0:n_action].set(aw3)
    slab = slab.at[ow3 + H_C_OFF:ow3 + H_C_OFF + h2, n_action:2 * n_action].set(cw3)
    slab = slab.at[ob3, 0:n_action].set(ab3.reshape(-1))
    slab = slab.at[ob3, n_action:2 * n_action].set(cb3.reshape(-1))
    return slab.astype(dtype)   # single quantization point for the bf16 path


# ----------------------------------------------------------------------------
# Kernel: 3 fused matmuls (MXU, f32 accumulation) + tanh/exp + masked softmax,
# narrow lane-sliced store.
# ----------------------------------------------------------------------------
def _fused_kernel(x_ref, p_ref, out_ref, *, n_action, dp, out_w,
                  ow1, ob1, ow2, ob2, ow3, ob3, act_dtype):
    x = x_ref[...]                                               # (TB, dp)

    w1 = p_ref[pl.ds(ow1, dp), :]                                # static, aligned slices
    b1 = p_ref[pl.ds(ob1, 1), :]
    h1 = jnp.tanh((jnp.dot(x, w1, preferred_element_type=jnp.float32)
                   + b1).astype(act_dtype))

    w2 = p_ref[pl.ds(ow2, LANE), :]
    b2 = p_ref[pl.ds(ob2, 1), :]
    h2 = jnp.tanh((jnp.dot(h1, w2, preferred_element_type=jnp.float32)
                   + b2).astype(act_dtype))

    w3 = p_ref[pl.ds(ow3, LANE), :]
    b3 = p_ref[pl.ds(ob3, 1), :]
    z = jnp.dot(h2, w3, preferred_element_type=jnp.float32) \
        + b3.astype(jnp.float32)                                 # (TB, 128) f32

    # Masked softmax (f32) over the actor's n_action lanes.
    col = jax.lax.broadcasted_iota(jnp.int32, z.shape, 1)
    is_logit = col < n_action
    logits = jnp.where(is_logit, z, jnp.float32(-1e30))
    m = jnp.max(logits, axis=-1, keepdims=True)
    e = jnp.exp(logits - m)
    s = jnp.sum(e, axis=-1, keepdims=True)
    inv = pl.reciprocal(s, approx=True)                          # EUP vrcp (free slot)
    inv = inv * (2.0 - s * inv)                                  # Newton step -> ~f32 exact
    policy = e * inv

    # Narrow store: cols [0,A)=policy, cols [A,2A)=value; drops the 16x
    # output write amplification of a full 128-lane f32 slab.
    fused = jnp.where(is_logit, policy, z)
    out_ref[...] = fused[:, :out_w]


# ----------------------------------------------------------------------------
# Wrapper: launches the gridded kernel, splits the narrow output.
# ----------------------------------------------------------------------------
def actor_critic_forward(x, param_slab, n_state, n_action,
                         compute_dtype=jnp.float32):
    B = x.shape[0]
    dp, ow1, ob1, ow2, ob2, ow3, ob3, rows = _slab_layout(n_state)
    assert param_slab.shape == (rows, LANE)
    assert param_slab.dtype == compute_dtype

    out_w = _round_up(2 * n_action, SUB)     # narrow, lane-masked output width

    # No host-side padding when n_state is already sublane aligned; the ragged
    # last batch tile is handled by Pallas partial-block semantics (garbage OOB
    # rows are never written back, nothing to slice off on the batch axis).
    xc = x.astype(compute_dtype)
    if n_state % SUB != 0:
        xc = jnp.zeros((B, dp), compute_dtype).at[:, :n_state].set(xc)

    # Large batch tile: fewer ~0.35us grid steps, better DMA efficiency.  At
    # large B the grid has >=2 steps so ("parallel",) shards across v7x's TCs.
    tb = min(_round_up(B, SUB), MAX_TB)
    grid = (pl.cdiv(B, tb),)

    kernel = functools.partial(
        _fused_kernel, n_action=n_action, dp=dp, out_w=out_w,
        ow1=ow1, ob1=ob1, ow2=ow2, ob2=ob2, ow3=ow3, ob3=ob3,
        act_dtype=compute_dtype)

    out = pl.pallas_call(
        kernel,
        out_shape=jax.ShapeDtypeStruct((B, out_w), jnp.float32),
        grid_spec=pltpu.PrefetchScalarGridSpec(
            num_scalar_prefetch=0,
            grid=grid,
            in_specs=[
                pl.BlockSpec((tb, dp), lambda i: (i, 0)),      # batch tile marches
                pl.BlockSpec((rows, LANE), lambda i: (0, 0)),  # slab stays resident
            ],
            out_specs=pl.BlockSpec((tb, out_w), lambda i: (i, 0)),
        ),
        compiler_params=pltpu.CompilerParams(
            dimension_semantics=("parallel",)),
    )(xc, param_slab)

    policy = out[:, :n_action]
    value = out[:, n_action:2 * n_action]
    return policy, value


# ----------------------------------------------------------------------------
# Deterministic parameter construction (matches nn.Linear default init ranges).
# ----------------------------------------------------------------------------
def init_mlp_params(key, dims):
    params = []
    for i in range(len(dims) - 1):
        fan_in, fan_out = dims[i], dims[i + 1]
        key, kw, kb = jax.random.split(key, 3)
        bound = 1.0 / jnp.sqrt(jnp.float32(fan_in))
        w = jax.random.uniform(kw, (fan_in, fan_out), jnp.float32, -bound, bound)
        b = jax.random.uniform(kb, (1, fan_out), jnp.float32, -bound, bound)
        params += [w, b]
    return key, tuple(params)


def reference_forward(x, actor_params, critic_params):
    def mlp(p):
        w1, b1, w2, b2, w3, b3 = p
        h1 = jnp.tanh(x @ w1 + b1)
        h2 = jnp.tanh(h1 @ w2 + b2)
        return h2 @ w3 + b3
    logits = mlp(actor_params)
    policy = jax.nn.softmax(logits, axis=-1)
    value = mlp(critic_params)
    return policy, value


if __name__ == "__main__":
    # Shapes consistent with ActorCritic(n_state, n_action, layers=[30, 30]).
    # NOTE: per the provided module, the critic head is n_action wide (it is
    # constructed as NN(n_state, n_action, ...)), so value has shape (B, A).
    batch, n_state, n_action = 8, 16, 4
    layers = [30, 30]
    dims = [n_state] + layers + [n_action]

    key = jax.random.PRNGKey(0)
    key, actor_params = init_mlp_params(key, dims)
    key, critic_params = init_mlp_params(key, dims)
    key, kx = jax.random.split(key)
    x = jax.random.normal(kx, (batch, n_state), jnp.float32)

    ref_policy, ref_value = reference_forward(x, actor_params, critic_params)

    # --- f32 path (exact-accuracy / v5e path) ---
    slab32 = pack_params(actor_params, critic_params, n_state, n_action,
                         jnp.float32)
    policy, value = actor_critic_forward(x, slab32, n_state, n_action,
                                         jnp.float32)
    policy, value = jax.block_until_ready((policy, value))
    assert policy.shape == (batch, n_action) and value.shape == (batch, n_action)
    assert jnp.allclose(policy, ref_policy, atol=1e-4, rtol=1e-4)
    assert jnp.allclose(value, ref_value, atol=1e-4, rtol=1e-4)
    assert jnp.allclose(jnp.sum(policy, axis=-1), 1.0, atol=1e-4)

    # --- bf16 path (v6e/v7x perf path: bf16 inputs/weights/tanh, f32 MXU
    #     accumulation, f32 softmax stats).  Tolerance reflects bf16 inputs. ---
    slab16 = pack_params(actor_params, critic_params, n_state, n_action,
                         jnp.bfloat16)
    policy16, value16 = actor_critic_forward(x, slab16, n_state, n_action,
                                             jnp.bfloat16)
    policy16, value16 = jax.block_until_ready((policy16, value16))
    assert jnp.allclose(policy16, ref_policy, atol=3e-2, rtol=3e-2)
    assert jnp.allclose(value16, ref_value, atol=3e-2, rtol=3e-2)
    assert jnp.allclose(jnp.sum(policy16, axis=-1), 1.0, atol=1e-2)

    print("KERNEL_OK")
</pallas_src>

<mosaic_0001>
module attributes {stable_mosaic.version = 11 : i64} {
  func.func @_fused_kernel(%arg0: i32, %arg1: memref<8x16xf32, #tpu.memory_space<vmem>>, %arg2: memref<296x128xf32, #tpu.memory_space<vmem>>, %arg3: memref<8x8xf32, #tpu.memory_space<vmem>>) attributes {dimension_semantics = [#tpu.dimension_semantics<parallel>], iteration_bounds = array<i64: 1>, scalar_prefetch = 0 : i64, scratch_operands = 0 : i64, tpu.core_type = #tpu.core_type<tc>, window_params = [{transform_indices = @transform_0, window_bounds = array<i64: 8, 16>}, {pipeline_mode = #tpu.pipeline_mode<synchronous>, transform_indices = @transform_1, window_bounds = array<i64: 296, 128>}, {transform_indices = @transform_2, window_bounds = array<i64: 8, 8>}]} {
    %c0 = arith.constant 0 : index
    %c0_0 = arith.constant 0 : index
    %0 = vector.load %arg1[%c0, %c0_0] : memref<8x16xf32, #tpu.memory_space<vmem>>, vector<8x16xf32>
    %c0_1 = arith.constant 0 : index
    %c0_2 = arith.constant 0 : index
    %1 = vector.load %arg2[%c0_1, %c0_2] : memref<296x128xf32, #tpu.memory_space<vmem>>, vector<16x128xf32>
    %c16 = arith.constant 16 : index
    %c0_3 = arith.constant 0 : index
    %2 = vector.load %arg2[%c16, %c0_3] : memref<296x128xf32, #tpu.memory_space<vmem>>, vector<1x128xf32>
    %cst = arith.constant dense<0.000000e+00> : vector<8x128xf32>
    %3 = tpu.matmul %0, %1, %cst {dimension_numbers = #tpu.dot_dimension_numbers<[1], [0], [0], [1], [0, 0, 1, 1], [], []>} : vector<8x16xf32>, vector<16x128xf32>, vector<8x128xf32> -> vector<8x128xf32>
    %4 = vector.broadcast %2 : vector<1x128xf32> to vector<8x128xf32>
    %5 = arith.addf %3, %4 : vector<8x128xf32>
    %6 = math.tanh %5 : vector<8x128xf32>
    %c24 = arith.constant 24 : index
    %c0_4 = arith.constant 0 : index
    %7 = vector.load %arg2[%c24, %c0_4] : memref<296x128xf32, #tpu.memory_space<vmem>>, vector<128x128xf32>
    %c152 = arith.constant 152 : index
    %c0_5 = arith.constant 0 : index
    %8 = vector.load %arg2[%c152, %c0_5] : memref<296x128xf32, #tpu.memory_space<vmem>>, vector<1x128xf32>
    %cst_6 = arith.constant dense<0.000000e+00> : vector<8x128xf32>
    %9 = tpu.matmul %6, %7, %cst_6 {dimension_numbers = #tpu.dot_dimension_numbers<[1], [0], [0], [1], [0, 0, 1, 1], [], []>} : vector<8x128xf32>, vector<128x128xf32>, vector<8x128xf32> -> vector<8x128xf32>
    %10 = vector.broadcast %8 : vector<1x128xf32> to vector<8x128xf32>
    %11 = arith.addf %9, %10 : vector<8x128xf32>
    %12 = math.tanh %11 : vector<8x128xf32>
    %c160 = arith.constant 160 : index
    %c0_7 = arith.constant 0 : index
    %13 = vector.load %arg2[%c160, %c0_7] : memref<296x128xf32, #tpu.memory_space<vmem>>, vector<128x128xf32>
    %c288 = arith.constant 288 : index
    %c0_8 = arith.constant 0 : index
    %14 = vector.load %arg2[%c288, %c0_8] : memref<296x128xf32, #tpu.memory_space<vmem>>, vector<1x128xf32>
    %cst_9 = arith.constant dense<0.000000e+00> : vector<8x128xf32>
    %15 = tpu.matmul %12, %13, %cst_9 {dimension_numbers = #tpu.dot_dimension_numbers<[1], [0], [0], [1], [0, 0, 1, 1], [], []>} : vector<8x128xf32>, vector<128x128xf32>, vector<8x128xf32> -> vector<8x128xf32>
    %16 = vector.broadcast %14 : vector<1x128xf32> to vector<8x128xf32>
    %17 = arith.addf %15, %16 : vector<8x128xf32>
    %18 = tpu.iota {dimensions = array<i32: 1>} : vector<8x128xi32>
    %c4_i32 = arith.constant 4 : i32
    %19 = vector.broadcast %c4_i32 : i32 to vector<8x128xi32>
    %20 = arith.cmpi slt, %18, %19 : vector<8x128xi32>
    %cst_10 = arith.constant -1.000000e+30 : f32
    %21 = vector.broadcast %cst_10 : f32 to vector<8x128xf32>
    %22 = arith.select %20, %17, %21 : vector<8x128xi1>, vector<8x128xf32>
    %cst_11 = arith.constant dense<0xFF800000> : vector<8xf32>
    %23 = vector.multi_reduction <maximumf>, %22, %cst_11 [1] : vector<8x128xf32> to vector<8xf32>
    %24 = vector.shape_cast %23 : vector<8xf32> to vector<8x1xf32>
    %25 = vector.broadcast %24 : vector<8x1xf32> to vector<8x128xf32>
    %26 = arith.subf %22, %25 : vector<8x128xf32>
    %27 = math.exp %26 : vector<8x128xf32>
    %cst_12 = arith.constant dense<0.000000e+00> : vector<8xf32>
    %28 = vector.multi_reduction <add>, %27, %cst_12 [1] : vector<8x128xf32> to vector<8xf32>
    %29 = vector.shape_cast %28 : vector<8xf32> to vector<8x1xf32>
    %30 = tpu.reciprocal %29 {approx = true} : vector<8x1xf32> -> vector<8x1xf32>
    %31 = arith.mulf %29, %30 : vector<8x1xf32>
    %cst_13 = arith.constant 2.000000e+00 : f32
    %32 = vector.broadcast %cst_13 : f32 to vector<8x1xf32>
    %33 = arith.subf %32, %31 : vector<8x1xf32>
    %34 = arith.mulf %30, %33 : vector<8x1xf32>
    %35 = vector.broadcast %34 : vector<8x1xf32> to vector<8x128xf32>
    %36 = arith.mulf %27, %35 : vector<8x128xf32>
    %37 = arith.select %20, %36, %17 : vector<8x128xi1>, vector<8x128xf32>
    %38 = vector.extract_strided_slice %37 {offsets = [0, 0], sizes = [8, 8], strides = [1, 1]} : vector<8x128xf32> to vector<8x8xf32>
    %c0_14 = arith.constant 0 : index
    %c0_15 = arith.constant 0 : index
    %39 = vector.load %arg3[%c0_14, %c0_15] : memref<8x8xf32, #tpu.memory_space<vmem>>, vector<8x8xf32>
    tpu.vector_store %arg3[%c0_14, %c0_15], %38 {strides = array<i32>} : memref<8x8xf32, #tpu.memory_space<vmem>>, vector<8x8xf32>,
    return
  }
  func.func @transform_0(%arg0: i32) -> (i32, i32) {
    %c0_i32 = arith.constant 0 : i32
    %c0_i32_0 = arith.constant 0 : i32
    return %arg0, %c0_i32 : i32, i32
  }
  func.func @transform_1(%arg0: i32) -> (i32, i32) {
    %c0_i32 = arith.constant 0 : i32
    %c0_i32_0 = arith.constant 0 : i32
    %c0_i32_1 = arith.constant 0 : i32
    return %c0_i32, %c0_i32_0 : i32, i32
  }
  func.func @transform_2(%arg0: i32) -> (i32, i32) {
    %c0_i32 = arith.constant 0 : i32
    %c0_i32_0 = arith.constant 0 : i32
    return %arg0, %c0_i32 : i32, i32
  }
}

</mosaic_0001>

<llo_original>
// kernel: tpu_custom_call.1
$region0: #{tpu_custom_call.1}
  #allocation0 [shape = 'u32[]', space=smem, size = 0x4, offset = 0x4, fixed_abs, tag = 'smem constant byte address 0x4 - core index']
  #allocation1 [shape = 'u32[72,128]{1,0:T(1,128)}', space=vmem, size = 0x9000, scoped, tag = 'internal scratch']
  %s0 = inlined_call_operand.hbm [shape: f32[8,16], index: 0, kind: input, shape index: {}]
  %s1 = inlined_call_operand.hbm [shape: f32[296,128], index: 1, kind: input, shape index: {}]
  %s2 = inlined_call_operand.hbm [shape: f32[8,8], index: 2, kind: output, shape index: {}]
  %s3 = sld [smem:[#allocation0]]
  $region26: #{tpu_custom_call.1} parent=0
    _
  %s5 = ssub.s32 1, %s3
  %s6 = scalar_select 0, %s5, %s3
  $region1: #{tpu_custom_call.1} parent=0
    #allocation2 [shape = 'u8[4096]{0}', space=vmem, size = 0x1000, scoped, tag = 'input window, operand 0, single buffered']
    #allocation3 [shape = 's32[1]{0}', space=sflag, size = 0x4, scoped, tag = 'scoped memory for tpu_custom_call.1']
    #allocation4 [shape = 's32[1]{0}', space=sflag, size = 0x4, scoped, tag = 'scoped memory for tpu_custom_call.1']
    #allocation5 [shape = 'u8[151552]{0}', space=vmem, size = 0x25000, scoped, tag = 'input window, operand 1, single buffered']
    #allocation6 [shape = 's32[1]{0}', space=sflag, size = 0x4, scoped, tag = 'scoped memory for tpu_custom_call.1']
    #allocation7 [shape = 'u8[4096]{0}', space=vmem, size = 0x1000, scoped, tag = 'output window, operand 0, single buffered']
    %7 = vsyncpa [#allocation3], 0
    %8 = vsyncpa [#allocation6], 0
    %9 = vsyncpa [#allocation4], 0
    // Predicated region
    $region2: #{tpu_custom_call.1} parent=1 // pred_check
      _
    $region3: #{tpu_custom_call.1} parent=1 // pred_check_branch
      %11 = sbr.rel (0) target = $region5
    $region4: #{tpu_custom_call.1} parent=1 // pred_region
      %13 = vsyncadd [#allocation3], 0
      %s15 = sshll.u32 %s0, 4
      %s16 = int_to_ptr.hbm [resolvable:$true] %s15
      %s17 = sshll.u32 [#allocation2], 4
      %s18 = int_to_ptr.vmem [resolvable:$true] %s17
      %20 = dma.hbm_to_vmem [thread:$0]  %s16, 128, %s18, [#allocation3]
    $region5: #{tpu_custom_call.1} parent=1 // pred_fallthru
      _
    // Predicated region
    $region6: #{tpu_custom_call.1} parent=1 // pred_check
      _
    $region7: #{tpu_custom_call.1} parent=1 // pred_check_branch
      %22 = sbr.rel (0) target = $region9
    $region8: #{tpu_custom_call.1} parent=1 // pred_region
      %24 = vsyncadd [#allocation6], 0
      %s25 = sshll.u32 %s1, 4
      %s26 = int_to_ptr.hbm [resolvable:$true] %s25
      %s27 = sshll.u32 [#allocation5], 4
      %s28 = int_to_ptr.vmem [resolvable:$true] %s27
      %33 = dma.hbm_to_vmem [thread:$0]  %s26, 4736, %s28, [#allocation6], 128, 128, 8
    $region9: #{tpu_custom_call.1} parent=1 // pred_fallthru
      _
    // Predicated region
    $region10: #{tpu_custom_call.1} parent=1 // pred_check
      _
    $region11: #{tpu_custom_call.1} parent=1 // pred_check_branch
      %35 = sbr.rel (0) target = $region13
    $region12: #{tpu_custom_call.1} parent=1 // pred_region
      %37 = dma.done [#allocation3], 128
    $region13: #{tpu_custom_call.1} parent=1 // pred_fallthru
      _
    // Predicated region
    $region14: #{tpu_custom_call.1} parent=1 // pred_check
      _
    $region15: #{tpu_custom_call.1} parent=1 // pred_check_branch
      %39 = sbr.rel (0) target = $region17
    $region16: #{tpu_custom_call.1} parent=1 // pred_region
      %41 = dma.done [#allocation6], 4736
    $region17: #{tpu_custom_call.1} parent=1 // pred_fallthru
      _
    %v42 = vld [vmem:[#allocation2] sm:$0xff]
    %v43 = vld [vmem:[#allocation5] sm:$0xff]
    %v44 = vld [vmem:[#allocation5 + $0x8] sm:$0xff]
    %v45 = vld [vmem:[#allocation5 + $0x10] sm:$0x1]
    %v46 = vperm.slane %v45, 0
    %vm47 = vcmask 130048
    %v49 = vsel %vm47, %v42, 0
    %51 = vmatpush.msra.mxu0 0.0
    %52 = vmatpush.msra.mxu0 0.0
    %53 = vmatpush.msra.mxu0 0.0
    %54 = vmatpush.msra.mxu0 0.0
    %55 = vmatpush.msra.mxu0 0.0
    %56 = vmatpush.msra.mxu0 0.0
    %57 = vmatpush.msra.mxu0 0.0
    %58 = vmatpush.msra.mxu0 0.0
    %59 = vmatpush.msra.mxu0 0.0
    %60 = vmatpush.msra.mxu0 0.0
    %61 = vmatpush.msra.mxu0 0.0
    %62 = vmatpush.msra.mxu0 0.0
    %63 = vmatpush.msra.mxu0 0.0
    %64 = vmatpush.msra.mxu0 0.0
    %65 = vmatpush.msra.mxu0 %v44
    %66 = vmatpush.msra.mxu0 %v43
    %67 = vmatmul.f32.gmra.mxu0 %v49
    %v68 = vpop.f32.mrf.mxu0
    %v69 = vadd.f32 %v46, %v68
    %70 = vdwg.mxu0
    %v71 = vtanh.pop %v69
    %v72 = vld [vmem:[#allocation5 + $0x18] sm:$0xff]
    %v73 = vld [vmem:[#allocation5 + $0x20] sm:$0xff]
    %v74 = vld [vmem:[#allocation5 + $0x28] sm:$0xff]
    %v75 = vld [vmem:[#allocation5 + $0x30] sm:$0xff]
    %v76 = vld [vmem:[#allocation5 + $0x38] sm:$0xff]
    %v77 = vld [vmem:[#allocation5 + $0x40] sm:$0xff]
    %v78 = vld [vmem:[#allocation5 + $0x48] sm:$0xff]
    %v79 = vld [vmem:[#allocation5 + $0x50] sm:$0xff]
    %v80 = vld [vmem:[#allocation5 + $0x58] sm:$0xff]
    %v81 = vld [vmem:[#allocation5 + $0x60] sm:$0xff]
    %v82 = vld [vmem:[#allocation5 + $0x68] sm:$0xff]
    %v83 = vld [vmem:[#allocation5 + $0x70] sm:$0xff]
    %v84 = vld [vmem:[#allocation5 + $0x78] sm:$0xff]
    %v85 = vld [vmem:[#allocation5 + $0x80] sm:$0xff]
    %v86 = vld [vmem:[#allocation5 + $0x88] sm:$0xff]
    %v87 = vld [vmem:[#allocation5 + $0x90] sm:$0xff]
    %v88 = vld [vmem:[#allocation5 + $0x98] sm:$0x1]
    %v89 = vperm.slane %v88, 0
    %90 = vmatpush.msra.mxu0 %v87
    %91 = vmatpush.msra.mxu0 %v86
    %92 = vmatpush.msra.mxu0 %v85
    %93 = vmatpush.msra.mxu0 %v84
    %94 = vmatpush.msra.mxu0 %v83
    %95 = vmatpush.msra.mxu0 %v82
    %96 = vmatpush.msra.mxu0 %v81
    %97 = vmatpush.msra.mxu0 %v80
    %98 = vmatpush.msra.mxu0 %v79
    %99 = vmatpush.msra.mxu0 %v78
    %100 = vmatpush.msra.mxu0 %v77
    %101 = vmatpush.msra.mxu0 %v76
    %102 = vmatpush.msra.mxu0 %v75
    %103 = vmatpush.msra.mxu0 %v74
    %104 = vmatpush.msra.mxu0 %v73
    %105 = vmatpush.msra.mxu0 %v72
    %106 = vmatmul.f32.gmra.mxu0 %v71
    %v107 = vpop.f32.mrf.mxu0
    %v108 = vadd.f32 %v89, %v107
    %109 = vdwg.mxu0
    %v110 = vtanh.pop %v108
    %v111 = vld [vmem:[#allocation5 + $0xa0] sm:$0xff]
    %v112 = vld [vmem:[#allocation5 + $0xa8] sm:$0xff]
    %v113 = vld [vmem:[#allocation5 + $0xb0] sm:$0xff]
    %v114 = vld [vmem:[#allocation5 + $0xb8] sm:$0xff]
    %v115 = vld [vmem:[#allocation5 + $0xc0] sm:$0xff]
    %v116 = vld [vmem:[#allocation5 + $0xc8] sm:$0xff]
    %v117 = vld [vmem:[#allocation5 + $0xd0] sm:$0xff]
    %v118 = vld [vmem:[#allocation5 + $0xd8] sm:$0xff]
    %v119 = vld [vmem:[#allocation5 + $0xe0] sm:$0xff]
    %v120 = vld [vmem:[#allocation5 + $0xe8] sm:$0xff]
    %v121 = vld [vmem:[#allocation5 + $0xf0] sm:$0xff]
    %v122 = vld [vmem:[#allocation5 + $0xf8] sm:$0xff]
    %v123 = vld [vmem:[#allocation5 + $0x100] sm:$0xff]
    %v124 = vld [vmem:[#allocation5 + $0x108] sm:$0xff]
    %v125 = vld [vmem:[#allocation5 + $0x110] sm:$0xff]
    %v126 = vld [vmem:[#allocation5 + $0x118] sm:$0xff]
    %v127 = vld [vmem:[#allocation5 + $0x120] sm:$0x1]
    %v128 = vperm.slane %v127, 0
    %129 = vmatpush.msra.mxu0 %v126
    %130 = vmatpush.msra.mxu0 %v125
    %131 = vmatpush.msra.mxu0 %v124
    %132 = vmatpush.msra.mxu0 %v123
    %133 = vmatpush.msra.mxu0 %v122
    %134 = vmatpush.msra.mxu0 %v121
    %135 = vmatpush.msra.mxu0 %v120
    %136 = vmatpush.msra.mxu0 %v119
    %137 = vmatpush.msra.mxu0 %v118
    %138 = vmatpush.msra.mxu0 %v117
    %139 = vmatpush.msra.mxu0 %v116
    %140 = vmatpush.msra.mxu0 %v115
    %141 = vmatpush.msra.mxu0 %v114
    %142 = vmatpush.msra.mxu0 %v113
    %143 = vmatpush.msra.mxu0 %v112
    %144 = vmatpush.msra.mxu0 %v111
    %145 = vmatmul.f32.gmra.mxu0 %v110
    %v146 = vpop.f32.mrf.mxu0
    %v147 = vadd.f32 %v128, %v146
    %148 = vdwg.mxu0
    %v149 = vlaneseq
    %v150 = vand.u32 %v149, 127
    %vm151 = vcmp.lt.s32.totalorder %v150, 4
    %v152 = vsel %vm151, %v147, -1e+30
    %153 = vmax.xlane.f32.xlu0 %v152
    %v154 = vpop.xlane.xlu0 %153
    %v155 = vsub.f32 %v152, %v154
    %v156 = vmul.f32 %v155, 1.442695
    %v157 = vpow.pop %v156
    %158 = vadd.xlane.f32.xlu0 %v157
    %v159 = vpop.xlane.xlu0 %158
    %v160 = vrcp.pop %v159
    %v161 = vmul.f32 %v159, %v160
    %v162 = vsub.f32 2.0, %v161
    %v163 = vmul.f32 %v160, %v162
    %v164 = vmul.f32 %v157, %v163
    %v165 = vsel %vm151, %v164, %v147
    %vm166 = vcmask 64512
    %167 = vst.msk [vmem:[#allocation7] sm:$0xff] %vm166, %v165
    // Predicated region
    $region18: #{tpu_custom_call.1} parent=1 // pred_check
      _
    $region19: #{tpu_custom_call.1} parent=1 // pred_check_branch
      %169 = sbr.rel (0) target = $region21
    $region20: #{tpu_custom_call.1} parent=1 // pred_region
      %171 = vsyncadd [#allocation4], 0
      %s173 = sshll.u32 [#allocation7], 4
      %s174 = int_to_ptr.vmem [resolvable:$true] %s173
      %s175 = sshll.u32 %s2, 4
      %s176 = int_to_ptr.hbm [resolvable:$true] %s175
      %178 = dma.vmem_to_hbm [thread:$0]  %s174, 128, %s176, [#allocation4]
    $region21: #{tpu_custom_call.1} parent=1 // pred_fallthru
      _
    // Predicated region
    $region22: #{tpu_custom_call.1} parent=1 // pred_check
      _
    $region23: #{tpu_custom_call.1} parent=1 // pred_check_branch
      %180 = sbr.rel (0) target = $region25
    $region24: #{tpu_custom_call.1} parent=1 // pred_region
      %182 = dma.done [#allocation4], 128
    $region25: #{tpu_custom_call.1} parent=1 // pred_fallthru
      _
    %183 = vsyncpa [#allocation3], 1
    %184 = vsyncpa [#allocation6], 1
    %185 = vsyncpa [#allocation4], 1

</llo_original>
